<compile_context>
chip_gen: v7x
topology: tpu7x:2x2x1
jax: 0.10.0
libtpu: 0.0.40
codegen_flags: <defaults>
</compile_context>

<pallas_src>
import functools

import jax
import jax.numpy as jnp
from jax.experimental import pallas as pl
from jax.experimental.pallas import tpu as pltpu

BN_EPS = 1e-5
LEAKY_SLOPE = 0.1


# --------------------------------------------------------------------------------------
# Fused two-phase kernel.  grid = (2, nbt): axis 0 = phase (0 stats, 1 apply), axis 1 =
# batch tile.  Both axes are "arbitrary" (phase 1 depends on phase 0; phase 0 is a
# reduction into VMEM scratch).
#
# Scratch refs (persist across grid steps):
#   msum_ref: (1, H) column sums of h during phase 0; overwritten with the mean at the
#             phase-0 finalize and read as the mean in phase 1.
#   ssq_ref:  (1, H) column sums of h*h during phase 0; overwritten with the BN scale
#             1/sqrt(var + eps) at the finalize and read as the scale in phase 1.
# --------------------------------------------------------------------------------------
def _encoder_kernel(x_ref, w1_ref, w2_ref, b2_ref, out_ref, msum_ref, ssq_ref, *, inv_n):
    p = pl.program_id(0)                  # phase
    i = pl.program_id(1)                  # batch tile
    last = pl.num_programs(1) - 1

    # h = x @ w1 (bias dropped: batch-stat BN with gamma=1/beta=0 cancels it exactly).
    # Needed by both phases; recompute is cheaper than staging (B, H) through HBM because
    # d_in < 2*H for this module's shapes.
    h = jnp.dot(x_ref[...], w1_ref[...], preferred_element_type=jnp.float32)

    @pl.when(jnp.logical_and(p == 0, i == 0))
    def _init():
        msum_ref[...] = jnp.zeros_like(msum_ref)
        ssq_ref[...] = jnp.zeros_like(ssq_ref)

    @pl.when(p == 0)
    def _accumulate():
        # Zero-padded batch rows give h == 0 and contribute nothing to either sum, so no
        # masking is needed as long as inv_n uses the true (unpadded) batch size.
        msum_ref[...] += jnp.sum(h, axis=0, keepdims=True)
        ssq_ref[...] += jnp.sum(h * h, axis=0, keepdims=True)

    @pl.when(jnp.logical_and(p == 0, i == last))
    def _finalize():
        mean = msum_ref[...] * inv_n
        var = jnp.maximum(ssq_ref[...] * inv_n - mean * mean, 0.0)   # biased (training BN)
        msum_ref[...] = mean                                         # reused as mean
        ssq_ref[...] = jax.lax.rsqrt(var + BN_EPS)                   # reused as BN scale

    @pl.when(p == 1)
    def _apply():
        hn = (h - msum_ref[...]) * ssq_ref[...]
        o = jnp.maximum(hn, LEAKY_SLOPE * hn)       # == max(hn, leaky_relu(hn, 0.1))
        z = jnp.dot(o, w2_ref[...], preferred_element_type=jnp.float32) + b2_ref[...]
        z_max = jnp.max(z, axis=1, keepdims=True)
        e = jnp.exp(z - z_max)
        denom = jnp.sum(e, axis=1, keepdims=True)
        # Exact reciprocal keeps the strict 2e-5 accuracy check (approx=True would go to
        # the otherwise-idle EUP if the tolerance can be relaxed).
        out_ref[...] = e * pl.reciprocal(denom, approx=False)


def encoder_forward(x, w1, b1, w2, b2, *, tile_b=None):
    """Pallas TPU forward of the PyTorch Encoder.

    x: (B, D_in); w1: (H, D_in); b1: (H,); w2: (K, H); b2: (K,)  (torch nn.Linear layouts).

    b1 is intentionally unused: BatchNorm1d is created inside forward() (training mode,
    batch statistics, gamma=1, beta=0), which exactly cancels a per-feature constant bias.
    """
    del b1  # mathematically a no-op under batch-stat BatchNorm
    B, d_in = x.shape
    H = w1.shape[0]
    K = w2.shape[0]

    x32 = x.astype(jnp.float32)
    w1_t = w1.T.astype(jnp.float32)                 # (D_in, H) — lane-dense RHS for the MXU
    w2_t = w2.T.astype(jnp.float32)                 # (H, K)
    b2_row = b2.reshape(1, K).astype(jnp.float32)   # (1, K)

    # ---- batch-tile size: VMEM-aware (pinned weights + double-buffered tiles) ----------
    VMEM_LIMIT_BYTES = 48 * 1024 * 1024             # < 64 MiB physical on v7x, ample on v5e/v6e
    if tile_b is None:
        # Pinned buffers (weights, counted 2x for buffering) + padded small tiles
        # (b2 row, stats scratch each pad to an (8,128) f32 tile).
        fixed_bytes = 4 * (2 * d_in * H + 2 * H * K) + 4 * (8 * 128) * 4
        # Per-row: double-buffered x and out tiles + live intermediates (h, hn/o, z/e).
        per_row_bytes = 4 * (2 * d_in + 2 * K + 3 * H + 3 * K)
        budget = 28 * 1024 * 1024                   # headroom under the 48 MiB scoped limit
        cap = max(8, (budget - fixed_bytes) // max(per_row_bytes, 1))
        tile_b = max(8, (int(cap) // 8) * 8)        # (8, 128) sublane constraint
    else:
        tile_b = max(8, (int(tile_b) // 8) * 8)
    b_ceil8 = ((B + 7) // 8) * 8
    tile_b = min(tile_b, b_ceil8)

    nbt = pl.cdiv(B, tile_b)
    B_pad = nbt * tile_b
    if B_pad != B:
        # Zero rows are exact: h for them is 0 (no bias) so the BN sums are untouched; the
        # divisor below is the true B and the padded output rows are sliced off.
        x32 = jnp.pad(x32, ((0, B_pad - B), (0, 0)))

    kernel = functools.partial(_encoder_kernel, inv_n=float(1.0 / B))

    out_pad = pl.pallas_call(
        kernel,
        out_shape=jax.ShapeDtypeStruct((B_pad, K), jnp.float32),
        grid_spec=pltpu.PrefetchScalarGridSpec(
            num_scalar_prefetch=0,
            grid=(2, nbt),
            in_specs=[
                pl.BlockSpec((tile_b, d_in), lambda p, i: (i, 0)),   # x tile (both phases)
                pl.BlockSpec((d_in, H), lambda p, i: (0, 0)),        # w1^T, pinned
                pl.BlockSpec((H, K), lambda p, i: (0, 0)),           # w2^T, pinned
                pl.BlockSpec((1, K), lambda p, i: (0, 0)),           # b2 row, pinned
            ],
            # Index pinned to block 0 during the stats phase (i * 0 == 0): no writebacks of
            # uninitialized data; every block i is written once during the apply phase.
            out_specs=pl.BlockSpec((tile_b, K), lambda p, i: (i * p, 0)),
            scratch_shapes=[pltpu.VMEM((1, H), jnp.float32),   # sum -> mean
                            pltpu.VMEM((1, H), jnp.float32)],  # sumsq -> BN scale
        ),
        compiler_params=pltpu.CompilerParams(
            dimension_semantics=("arbitrary", "arbitrary"),
            vmem_limit_bytes=VMEM_LIMIT_BYTES,
        ),
    )(x32, w1_t, w2_t, b2_row)

    return out_pad[:B] if B_pad != B else out_pad


def encoder_reference(x, w1, b1, w2, b2):
    """Pure-JAX reference mirroring the PyTorch forward exactly (including b1)."""
    h = x @ w1.T + b1
    mean = jnp.mean(h, axis=0, keepdims=True)
    var = jnp.mean((h - mean) ** 2, axis=0, keepdims=True)   # biased, like training BN
    hn = (h - mean) / jnp.sqrt(var + BN_EPS)
    leak = jnp.where(hn >= 0, hn, LEAKY_SLOPE * hn)
    o = jnp.maximum(hn, leak)
    z = o @ w2.T + b2
    return jax.nn.softmax(z, axis=1)


if __name__ == "__main__":
    # B=20 with tile_b=8 exercises zero-padding (B_pad=24), the multi-tile stats reduction
    # and the fused phase boundary; the second call uses the auto tile (single tile).
    B, D_IN, HIDDEN, LATENT = 20, 16, 32, 8

    key = jax.random.PRNGKey(0)
    kx, kw1, kb1, kw2, kb2 = jax.random.split(key, 5)

    x = jax.random.normal(kx, (B, D_IN), dtype=jnp.float32)
    # torch.nn.Linear layouts: weight (out, in), bias (out,)
    w1 = jax.random.normal(kw1, (HIDDEN, D_IN), dtype=jnp.float32) * 0.1
    b1 = jax.random.normal(kb1, (HIDDEN,), dtype=jnp.float32) * 0.1
    w2 = jax.random.normal(kw2, (LATENT, HIDDEN), dtype=jnp.float32) * 0.1
    b2 = jax.random.normal(kb2, (LATENT,), dtype=jnp.float32) * 0.1

    fwd = jax.jit(encoder_forward, static_argnames=("tile_b",))

    ref = encoder_reference(x, w1, b1, w2, b2)

    out = fwd(x, w1, b1, w2, b2, tile_b=8)          # multi-tile + padded path
    jax.block_until_ready(out)
    assert out.shape == (B, LATENT)
    err = float(jnp.max(jnp.abs(out - ref)))
    assert jnp.allclose(out, ref, atol=2e-5, rtol=2e-5), f"max abs err {err}"
    assert jnp.allclose(jnp.sum(out, axis=1), jnp.ones((B,)), atol=1e-5)

    out2 = fwd(x, w1, b1, w2, b2)                   # auto-tile (single-tile) path
    jax.block_until_ready(out2)
    err2 = float(jnp.max(jnp.abs(out2 - ref)))
    assert jnp.allclose(out2, ref, atol=2e-5, rtol=2e-5), f"max abs err {err2}"

    print("KERNEL_OK")
</pallas_src>

<mosaic_0001>
module attributes {stable_mosaic.version = 11 : i64} {
  func.func @_encoder_kernel(%arg0: i32, %arg1: i32, %arg2: memref<8x16xf32, #tpu.memory_space<vmem>>, %arg3: memref<16x32xf32, #tpu.memory_space<vmem>>, %arg4: memref<32x8xf32, #tpu.memory_space<vmem>>, %arg5: memref<1x8xf32, #tpu.memory_space<vmem>>, %arg6: memref<8x8xf32, #tpu.memory_space<vmem>>, %arg7: memref<1x32xf32, #tpu.memory_space<vmem>>, %arg8: memref<1x32xf32, #tpu.memory_space<vmem>>) attributes {dimension_semantics = [#tpu.dimension_semantics<arbitrary>, #tpu.dimension_semantics<arbitrary>], iteration_bounds = array<i64: 2, 3>, scalar_prefetch = 0 : i64, scratch_operands = 2 : i64, tpu.core_type = #tpu.core_type<tc>, window_params = [{transform_indices = @transform_0, window_bounds = array<i64: 8, 16>}, {pipeline_mode = #tpu.pipeline_mode<synchronous>, transform_indices = @transform_1, window_bounds = array<i64: 16, 32>}, {pipeline_mode = #tpu.pipeline_mode<synchronous>, transform_indices = @transform_2, window_bounds = array<i64: 32, 8>}, {pipeline_mode = #tpu.pipeline_mode<synchronous>, transform_indices = @transform_3, window_bounds = array<i64: 1, 8>}, {transform_indices = @transform_4, window_bounds = array<i64: 8, 8>}]} {
    %c0 = arith.constant 0 : index
    %c0_0 = arith.constant 0 : index
    %0 = vector.load %arg2[%c0, %c0_0] : memref<8x16xf32, #tpu.memory_space<vmem>>, vector<8x16xf32>
    %c0_1 = arith.constant 0 : index
    %c0_2 = arith.constant 0 : index
    %1 = vector.load %arg3[%c0_1, %c0_2] : memref<16x32xf32, #tpu.memory_space<vmem>>, vector<16x32xf32>
    %cst = arith.constant dense<0.000000e+00> : vector<8x32xf32>
    %2 = tpu.matmul %0, %1, %cst {dimension_numbers = #tpu.dot_dimension_numbers<[1], [0], [0], [1], [0, 0, 1, 1], [], []>} : vector<8x16xf32>, vector<16x32xf32>, vector<8x32xf32> -> vector<8x32xf32>
    %c0_i32 = arith.constant 0 : i32
    %3 = arith.cmpi eq, %arg0, %c0_i32 : i32
    %c0_i32_3 = arith.constant 0 : i32
    %4 = arith.cmpi eq, %arg1, %c0_i32_3 : i32
    %5 = arith.andi %3, %4 : i1
    %6 = arith.extui %5 : i1 to i32
    %c0_i32_4 = arith.constant 0 : i32
    %7 = arith.cmpi ne, %6, %c0_i32_4 : i32
    scf.if %7 {
      %cst_10 = arith.constant 0.000000e+00 : f32
      %19 = vector.broadcast %cst_10 : f32 to vector<1x32xf32>
      %c0_11 = arith.constant 0 : index
      %c0_12 = arith.constant 0 : index
      %20 = vector.load %arg7[%c0_11, %c0_12] : memref<1x32xf32, #tpu.memory_space<vmem>>, vector<1x32xf32>
      tpu.vector_store %arg7[%c0_11, %c0_12], %19 {strides = array<i32>} : memref<1x32xf32, #tpu.memory_space<vmem>>, vector<1x32xf32>,
      %cst_13 = arith.constant 0.000000e+00 : f32
      %21 = vector.broadcast %cst_13 : f32 to vector<1x32xf32>
      %c0_14 = arith.constant 0 : index
      %c0_15 = arith.constant 0 : index
      %22 = vector.load %arg8[%c0_14, %c0_15] : memref<1x32xf32, #tpu.memory_space<vmem>>, vector<1x32xf32>
      tpu.vector_store %arg8[%c0_14, %c0_15], %21 {strides = array<i32>} : memref<1x32xf32, #tpu.memory_space<vmem>>, vector<1x32xf32>,
    } else {
    }
    %c0_i32_5 = arith.constant 0 : i32
    %8 = arith.cmpi eq, %arg0, %c0_i32_5 : i32
    %9 = arith.extui %8 : i1 to i32
    %c0_i32_6 = arith.constant 0 : i32
    %10 = arith.cmpi ne, %9, %c0_i32_6 : i32
    scf.if %10 {
      %c0_10 = arith.constant 0 : index
      %c0_11 = arith.constant 0 : index
      %19 = vector.load %arg7[%c0_10, %c0_11] : memref<1x32xf32, #tpu.memory_space<vmem>>, vector<1x32xf32>
      %cst_12 = arith.constant dense<0.000000e+00> : vector<32xf32>
      %20 = vector.multi_reduction <add>, %2, %cst_12 [0] : vector<8x32xf32> to vector<32xf32>
      %21 = vector.shape_cast %20 : vector<32xf32> to vector<1x32xf32>
      %22 = arith.addf %19, %21 : vector<1x32xf32>
      %c0_13 = arith.constant 0 : index
      %c0_14 = arith.constant 0 : index
      %23 = vector.load %arg7[%c0_13, %c0_14] : memref<1x32xf32, #tpu.memory_space<vmem>>, vector<1x32xf32>
      tpu.vector_store %arg7[%c0_13, %c0_14], %22 {strides = array<i32>} : memref<1x32xf32, #tpu.memory_space<vmem>>, vector<1x32xf32>,
      %c0_15 = arith.constant 0 : index
      %c0_16 = arith.constant 0 : index
      %24 = vector.load %arg8[%c0_15, %c0_16] : memref<1x32xf32, #tpu.memory_space<vmem>>, vector<1x32xf32>
      %25 = arith.mulf %2, %2 : vector<8x32xf32>
      %cst_17 = arith.constant dense<0.000000e+00> : vector<32xf32>
      %26 = vector.multi_reduction <add>, %25, %cst_17 [0] : vector<8x32xf32> to vector<32xf32>
      %27 = vector.shape_cast %26 : vector<32xf32> to vector<1x32xf32>
      %28 = arith.addf %24, %27 : vector<1x32xf32>
      %c0_18 = arith.constant 0 : index
      %c0_19 = arith.constant 0 : index
      %29 = vector.load %arg8[%c0_18, %c0_19] : memref<1x32xf32, #tpu.memory_space<vmem>>, vector<1x32xf32>
      tpu.vector_store %arg8[%c0_18, %c0_19], %28 {strides = array<i32>} : memref<1x32xf32, #tpu.memory_space<vmem>>, vector<1x32xf32>,
    } else {
    }
    %c0_i32_7 = arith.constant 0 : i32
    %11 = arith.cmpi eq, %arg0, %c0_i32_7 : i32
    %c2_i32 = arith.constant 2 : i32
    %12 = arith.cmpi eq, %arg1, %c2_i32 : i32
    %13 = arith.andi %11, %12 : i1
    %14 = arith.extui %13 : i1 to i32
    %c0_i32_8 = arith.constant 0 : i32
    %15 = arith.cmpi ne, %14, %c0_i32_8 : i32
    scf.if %15 {
      %c0_10 = arith.constant 0 : index
      %c0_11 = arith.constant 0 : index
      %19 = vector.load %arg7[%c0_10, %c0_11] : memref<1x32xf32, #tpu.memory_space<vmem>>, vector<1x32xf32>
      %cst_12 = arith.constant 5.000000e-02 : f32
      %20 = vector.broadcast %cst_12 : f32 to vector<1x32xf32>
      %21 = arith.mulf %19, %20 : vector<1x32xf32>
      %c0_13 = arith.constant 0 : index
      %c0_14 = arith.constant 0 : index
      %22 = vector.load %arg8[%c0_13, %c0_14] : memref<1x32xf32, #tpu.memory_space<vmem>>, vector<1x32xf32>
      %cst_15 = arith.constant 5.000000e-02 : f32
      %23 = vector.broadcast %cst_15 : f32 to vector<1x32xf32>
      %24 = arith.mulf %22, %23 : vector<1x32xf32>
      %25 = arith.mulf %21, %21 : vector<1x32xf32>
      %26 = arith.subf %24, %25 : vector<1x32xf32>
      %cst_16 = arith.constant 0.000000e+00 : f32
      %27 = vector.broadcast %cst_16 : f32 to vector<1x32xf32>
      %28 = arith.maximumf %26, %27 : vector<1x32xf32>
      %c0_17 = arith.constant 0 : index
      %c0_18 = arith.constant 0 : index
      %29 = vector.load %arg7[%c0_17, %c0_18] : memref<1x32xf32, #tpu.memory_space<vmem>>, vector<1x32xf32>
      tpu.vector_store %arg7[%c0_17, %c0_18], %21 {strides = array<i32>} : memref<1x32xf32, #tpu.memory_space<vmem>>, vector<1x32xf32>,
      %cst_19 = arith.constant 9.99999974E-6 : f32
      %30 = vector.broadcast %cst_19 : f32 to vector<1x32xf32>
      %31 = arith.addf %28, %30 : vector<1x32xf32>
      %32 = math.rsqrt %31 : vector<1x32xf32>
      %c0_20 = arith.constant 0 : index
      %c0_21 = arith.constant 0 : index
      %33 = vector.load %arg8[%c0_20, %c0_21] : memref<1x32xf32, #tpu.memory_space<vmem>>, vector<1x32xf32>
      tpu.vector_store %arg8[%c0_20, %c0_21], %32 {strides = array<i32>} : memref<1x32xf32, #tpu.memory_space<vmem>>, vector<1x32xf32>,
    } else {
    }
    %c1_i32 = arith.constant 1 : i32
    %16 = arith.cmpi eq, %arg0, %c1_i32 : i32
    %17 = arith.extui %16 : i1 to i32
    %c0_i32_9 = arith.constant 0 : i32
    %18 = arith.cmpi ne, %17, %c0_i32_9 : i32
    scf.if %18 {
      %c0_10 = arith.constant 0 : index
      %c0_11 = arith.constant 0 : index
      %19 = vector.load %arg7[%c0_10, %c0_11] : memref<1x32xf32, #tpu.memory_space<vmem>>, vector<1x32xf32>
      %20 = vector.broadcast %19 : vector<1x32xf32> to vector<8x32xf32>
      %21 = arith.subf %2, %20 : vector<8x32xf32>
      %c0_12 = arith.constant 0 : index
      %c0_13 = arith.constant 0 : index
      %22 = vector.load %arg8[%c0_12, %c0_13] : memref<1x32xf32, #tpu.memory_space<vmem>>, vector<1x32xf32>
      %23 = vector.broadcast %22 : vector<1x32xf32> to vector<8x32xf32>
      %24 = arith.mulf %21, %23 : vector<8x32xf32>
      %cst_14 = arith.constant 1.000000e-01 : f32
      %25 = vector.broadcast %cst_14 : f32 to vector<8x32xf32>
      %26 = arith.mulf %25, %24 : vector<8x32xf32>
      %27 = arith.maximumf %24, %26 : vector<8x32xf32>
      %c0_15 = arith.constant 0 : index
      %c0_16 = arith.constant 0 : index
      %28 = vector.load %arg4[%c0_15, %c0_16] : memref<32x8xf32, #tpu.memory_space<vmem>>, vector<32x8xf32>
      %cst_17 = arith.constant dense<0.000000e+00> : vector<8x8xf32>
      %29 = tpu.matmul %27, %28, %cst_17 {dimension_numbers = #tpu.dot_dimension_numbers<[1], [0], [0], [1], [0, 0, 1, 1], [], []>} : vector<8x32xf32>, vector<32x8xf32>, vector<8x8xf32> -> vector<8x8xf32>
      %c0_18 = arith.constant 0 : index
      %c0_19 = arith.constant 0 : index
      %30 = vector.load %arg5[%c0_18, %c0_19] : memref<1x8xf32, #tpu.memory_space<vmem>>, vector<1x8xf32>
      %31 = vector.broadcast %30 : vector<1x8xf32> to vector<8x8xf32>
      %32 = arith.addf %29, %31 : vector<8x8xf32>
      %cst_20 = arith.constant dense<0xFF800000> : vector<8xf32>
      %33 = vector.multi_reduction <maximumf>, %32, %cst_20 [1] : vector<8x8xf32> to vector<8xf32>
      %34 = vector.shape_cast %33 : vector<8xf32> to vector<8x1xf32>
      %35 = vector.broadcast %34 : vector<8x1xf32> to vector<8x8xf32>
      %36 = arith.subf %32, %35 : vector<8x8xf32>
      %37 = math.exp %36 : vector<8x8xf32>
      %cst_21 = arith.constant dense<0.000000e+00> : vector<8xf32>
      %38 = vector.multi_reduction <add>, %37, %cst_21 [1] : vector<8x8xf32> to vector<8xf32>
      %39 = vector.shape_cast %38 : vector<8xf32> to vector<8x1xf32>
      %40 = tpu.reciprocal %39 : vector<8x1xf32> -> vector<8x1xf32>
      %41 = vector.broadcast %40 : vector<8x1xf32> to vector<8x8xf32>
      %42 = arith.mulf %37, %41 : vector<8x8xf32>
      %c0_22 = arith.constant 0 : index
      %c0_23 = arith.constant 0 : index
      %43 = vector.load %arg6[%c0_22, %c0_23] : memref<8x8xf32, #tpu.memory_space<vmem>>, vector<8x8xf32>
      tpu.vector_store %arg6[%c0_22, %c0_23], %42 {strides = array<i32>} : memref<8x8xf32, #tpu.memory_space<vmem>>, vector<8x8xf32>,
    } else {
    }
    return
  }
  func.func @transform_0(%arg0: i32, %arg1: i32) -> (i32, i32) {
    %c0_i32 = arith.constant 0 : i32
    %c0_i32_0 = arith.constant 0 : i32
    return %arg1, %c0_i32 : i32, i32
  }
  func.func @transform_1(%arg0: i32, %arg1: i32) -> (i32, i32) {
    %c0_i32 = arith.constant 0 : i32
    %c0_i32_0 = arith.constant 0 : i32
    %c0_i32_1 = arith.constant 0 : i32
    return %c0_i32, %c0_i32_0 : i32, i32
  }
  func.func @transform_2(%arg0: i32, %arg1: i32) -> (i32, i32) {
    %c0_i32 = arith.constant 0 : i32
    %c0_i32_0 = arith.constant 0 : i32
    %c0_i32_1 = arith.constant 0 : i32
    return %c0_i32, %c0_i32_0 : i32, i32
  }
  func.func @transform_3(%arg0: i32, %arg1: i32) -> (i32, i32) {
    %c0_i32 = arith.constant 0 : i32
    %c0_i32_0 = arith.constant 0 : i32
    %c0_i32_1 = arith.constant 0 : i32
    return %c0_i32, %c0_i32_0 : i32, i32
  }
  func.func @transform_4(%arg0: i32, %arg1: i32) -> (i32, i32) {
    %0 = arith.muli %arg1, %arg0 : i32
    %c0_i32 = arith.constant 0 : i32
    %c0_i32_0 = arith.constant 0 : i32
    return %0, %c0_i32 : i32, i32
  }
}

</mosaic_0001>

<llo_original>
// kernel: encoder_forward.1
$region0: #{encoder_forward.1}
  #allocation0 [shape = 'u32[]', space=smem, size = 0x4, offset = 0x4, fixed_abs, tag = 'smem constant byte address 0x4 - core index']
  #allocation1 [shape = 'u32[144,128]{1,0:T(1,128)}', space=vmem, size = 0x12000, scoped, tag = 'internal scratch']
  #allocation2 [shape = 'f32[1,32]{1,0:T(1,128)}', space=vmem, size = 0x200, scoped, tag = 'scratch operand']
  #allocation3 [shape = 'f32[1,32]{1,0:T(1,128)}', space=vmem, size = 0x200, scoped, tag = 'scratch operand']
  %s0 = inlined_call_operand.vmem [shape: f32[24,16], index: 0, kind: input, shape index: {}]
  %s1 = inlined_call_operand.vmem [shape: f32[16,32], index: 1, kind: input, shape index: {}]
  %s2 = inlined_call_operand.vmem [shape: f32[32,8], index: 2, kind: input, shape index: {}]
  %s3 = inlined_call_operand.vmem [shape: f32[1,8], index: 3, kind: input, shape index: {}]
  %s4 = inlined_call_operand.vmem [shape: f32[24,8], index: 4, kind: output, shape index: {}]
  %s5 = sld [smem:[#allocation0]]
  $region65: #{encoder_forward.1} parent=0
    _
  %s7 = ssub.s32 1, %s5
  %s8 = scalar_select 0, %s7, %s5
  loop: start=0, step=1, limit=8
  $region2: #{encoder_forward.1} parent=0 // loop_pre_header
    _
  $region3: #{encoder_forward.1} parent=0 // loop_header
    %s10 = sphi 0, %s14
    %p11 = scmp.ge.s32.totalorder %s10, 8
    %s17 = sphi 0, %s29
    %s18 = sphi 0, %s25
    %s19 = sphi 0, %s17
    %s20 = sphi 0, %s18
    %s21 = sphi 0, %s19
    %s22 = sphi 0, %s20
    %s32 = sphi 0, %s34
    %s35 = sphi 0, %s32
    %s36 = sphi 0, %s35
    %s52 = sphi 0, %s36
    %s56 = sphi 0, %s56
    %s58 = sphi 0, %s56
    %s59 = sphi 0, %s58
    %s73 = sphi 0, %s59
    %s77 = sphi 0, %s77
    %s79 = sphi 0, %s77
    %s80 = sphi 0, %s79
    %s94 = sphi 0, %s80
    %s98 = sphi 0, %s98
    %s100 = sphi 0, %s98
    %s101 = sphi 0, %s100
    %s115 = sphi 0, %s101
    %s123 = sphi 0, %s125
    %s126 = sphi 0, %s123
    %s127 = sphi 0, %s126
    %s143 = sphi 0, %s127
  $region4: #{encoder_forward.1} parent=0 // loop_header_branch
    %13 = sbr.rel (%p11) target = $region8
  $region5: #{encoder_forward.1} parent=0 // loop_body
    %s15 = ssub.s32 %s10, 1
    %s16 = ssub.s32 %s10, 2
    %s23 = sadd.s32 1, %s18
    %p24 = scmp.ge.s32.totalorder %s23, 3
    %s25 = scalar_select %p24, 0, %s23
    %s26 = sadd.s32 1, %s17
    %s27 = scalar_select %p24, %s26, %s17
    %p28 = scmp.ge.s32.totalorder %s27, 2
    %s29 = scalar_select %p28, 0, %s27
    %s30 = ssub.s32 %s18, %s25
    %p31 = scmp.eq.s32.totalorder %s30, 0
    %s33 = sadd.s32 %s32, 1
    %s34 = scalar_select %p31, %s32, %s33
    %p37 = pneg %p31
    %p38 = scmp.eq.s32.totalorder %s10, 5
    %p39 = por %p37, %p38
    %p40 = scmp.ne.s32.totalorder %s32, %s35
    %p41 = scmp.eq.s32.totalorder %s10, 0
    %p42 = por %p40, %p41
    %p43 = scmp.ne.s32.totalorder %s32, %s35
    %p44 = scmp.eq.s32.totalorder %s15, 5
    %p45 = por %p43, %p44
    %p46 = scmp.ne.s32.totalorder %s35, %s36
    %p47 = scmp.eq.s32.totalorder %s15, 0
    %p48 = por %p46, %p47
    %p49 = scmp.ne.s32.totalorder %s35, %s36
    %p50 = scmp.eq.s32.totalorder %s16, 5
    %p51 = por %p49, %p50
    %p53 = scmp.ne.s32.totalorder %s36, %s52
    %p54 = scmp.eq.s32.totalorder %s16, 0
    %p55 = por %p53, %p54
    %s57 = sadd.s32 %s56, 1
    %p60 = scmp.eq.s32.totalorder %s10, 5
    %p61 = scmp.ne.s32.totalorder %s56, %s58
    %p62 = scmp.eq.s32.totalorder %s10, 0
    %p63 = por %p61, %p62
    %p64 = scmp.ne.s32.totalorder %s56, %s58
    %p65 = scmp.eq.s32.totalorder %s15, 5
    %p66 = por %p64, %p65
    %p67 = scmp.ne.s32.totalorder %s58, %s59
    %p68 = scmp.eq.s32.totalorder %s15, 0
    %p69 = por %p67, %p68
    %p70 = scmp.ne.s32.totalorder %s58, %s59
    %p71 = scmp.eq.s32.totalorder %s16, 5
    %p72 = por %p70, %p71
    %p74 = scmp.ne.s32.totalorder %s59, %s73
    %p75 = scmp.eq.s32.totalorder %s16, 0
    %p76 = por %p74, %p75
    %s78 = sadd.s32 %s77, 1
    %p81 = scmp.eq.s32.totalorder %s10, 5
    %p82 = scmp.ne.s32.totalorder %s77, %s79
    %p83 = scmp.eq.s32.totalorder %s10, 0
    %p84 = por %p82, %p83
    %p85 = scmp.ne.s32.totalorder %s77, %s79
    %p86 = scmp.eq.s32.totalorder %s15, 5
    %p87 = por %p85, %p86
    %p88 = scmp.ne.s32.totalorder %s79, %s80
    %p89 = scmp.eq.s32.totalorder %s15, 0
    %p90 = por %p88, %p89
    %p91 = scmp.ne.s32.totalorder %s79, %s80
    %p92 = scmp.eq.s32.totalorder %s16, 5
    %p93 = por %p91, %p92
    %p95 = scmp.ne.s32.totalorder %s80, %s94
    %p96 = scmp.eq.s32.totalorder %s16, 0
    %p97 = por %p95, %p96
    %s99 = sadd.s32 %s98, 1
    %p102 = scmp.eq.s32.totalorder %s10, 5
    %p103 = scmp.ne.s32.totalorder %s98, %s100
    %p104 = scmp.eq.s32.totalorder %s10, 0
    %p105 = por %p103, %p104
    %p106 = scmp.ne.s32.totalorder %s98, %s100
    %p107 = scmp.eq.s32.totalorder %s15, 5
    %p108 = por %p106, %p107
    %p109 = scmp.ne.s32.totalorder %s100, %s101
    %p110 = scmp.eq.s32.totalorder %s15, 0
    %p111 = por %p109, %p110
    %p112 = scmp.ne.s32.totalorder %s100, %s101
    %p113 = scmp.eq.s32.totalorder %s16, 5
    %p114 = por %p112, %p113
    %p116 = scmp.ne.s32.totalorder %s101, %s115
    %p117 = scmp.eq.s32.totalorder %s16, 0
    %p118 = por %p116, %p117
    %s119 = smul.u32 %s18, %s17
    %s120 = smul.u32 %s25, %s29
    %s121 = ssub.s32 %s119, %s120
    %p122 = scmp.eq.s32.totalorder %s121, 0
    %s124 = sadd.s32 %s123, 1
    %s125 = scalar_select %p122, %s123, %s124
    %p128 = pneg %p122
    %p129 = scmp.eq.s32.totalorder %s10, 5
    %p130 = por %p128, %p129
    %p131 = scmp.ne.s32.totalorder %s123, %s126
    %p132 = scmp.eq.s32.totalorder %s10, 0
    %p133 = por %p131, %p132
    %p134 = scmp.ne.s32.totalorder %s123, %s126
    %p135 = scmp.eq.s32.totalorder %s15, 5
    %p136 = por %p134, %p135
    %p137 = scmp.ne.s32.totalorder %s126, %s127
    %p138 = scmp.eq.s32.totalorder %s15, 0
    %p139 = por %p137, %p138
    %p140 = scmp.ne.s32.totalorder %s126, %s127
    %p141 = scmp.eq.s32.totalorder %s16, 5
    %p142 = por %p140, %p141
    %p144 = scmp.ne.s32.totalorder %s127, %s143
    %p145 = scmp.eq.s32.totalorder %s16, 0
    %p146 = por %p144, %p145
    %p147 = scmp.le.s32.totalorder 1, %s10
    %p148 = scmp.lt.s32.totalorder %s10, 7
    %p149 = pnand %p147, %p148
    %p150 = pneg %p149
    // Predicated region
    $region9: #{encoder_forward.1} parent=5 // pred_check
      _
    $region10: #{encoder_forward.1} parent=5 // pred_check_branch
      %152 = sbr.rel (%p149) target = $region12
    $region11: #{encoder_forward.1} parent=5 // pred_region
      %s153 = ssub.s32 %s10, 1
      // Predicated region
      $region13: #{encoder_forward.1} parent=11 // pred_check
        %p154 = pneg %p69
      $region14: #{encoder_forward.1} parent=11 // pred_check_branch
        %156 = sbr.rel (%p154) target = $region16
      $region15: #{encoder_forward.1} parent=11 // pred_region
        _
      $region16: #{encoder_forward.1} parent=11 // pred_fallthru
        _
      // Predicated region
      $region17: #{encoder_forward.1} parent=11 // pred_check
        %p157 = pneg %p90
      $region18: #{encoder_forward.1} parent=11 // pred_check_branch
        %159 = sbr.rel (%p157) target = $region20
      $region19: #{encoder_forward.1} parent=11 // pred_region
        _
      $region20: #{encoder_forward.1} parent=11 // pred_fallthru
        _
      // Predicated region
      $region21: #{encoder_forward.1} parent=11 // pred_check
        %p160 = pneg %p111
      $region22: #{encoder_forward.1} parent=11 // pred_check_branch
        %162 = sbr.rel (%p160) target = $region24
      $region23: #{encoder_forward.1} parent=11 // pred_region
        _
      $region24: #{encoder_forward.1} parent=11 // pred_fallthru
        _
    $region12: #{encoder_forward.1} parent=5 // pred_fallthru
      _
    %p163 = scmp.lt.s32.totalorder %s10, 6
    // Predicated region
    $region25: #{encoder_forward.1} parent=5 // pred_check
      %p164 = pneg %p163
    $region26: #{encoder_forward.1} parent=5 // pred_check_branch
      %166 = sbr.rel (%p164) target = $region28
    $region27: #{encoder_forward.1} parent=5 // pred_region
      // Predicated region
      $region29: #{encoder_forward.1} parent=27 // pred_check
        %p167 = pneg %p42
      $region30: #{encoder_forward.1} parent=27 // pred_check_branch
        %169 = sbr.rel (%p167) target = $region32
      $region31: #{encoder_forward.1} parent=27 // pred_region
        %p170 = scmp.lt.s32.totalorder %s18, 2
        %s171 = scalar_select %p170, %s18, 2
        %s172 = smul.addr %s171, 8
        %s173 = scalar_lea.vmem %s0, %s172
      $region32: #{encoder_forward.1} parent=27 // pred_fallthru
        _
    $region28: #{encoder_forward.1} parent=5 // pred_fallthru
      _
    %p174 = scmp.le.s32.totalorder 1, %s10
    %p175 = scmp.lt.s32.totalorder %s10, 7
    %p176 = pnand %p174, %p175
    %p177 = pneg %p176
    // Predicated region
    $region33: #{encoder_forward.1} parent=5 // pred_check
      _
    $region34: #{encoder_forward.1} parent=5 // pred_check_branch
      %179 = sbr.rel (%p176) target = $region36
    $region35: #{encoder_forward.1} parent=5 // pred_region
      %s180 = ssub.s32 %s10, 1
      %p181 = scmp.lt.s32.totalorder %s20, 2
      %s182 = scalar_select %p181, %s20, 2
      %s183 = smul.addr %s182, 8
      %s184 = scalar_lea.vmem %s0, %s183
      %p185 = pneg %p48
      %p186 = pneg %p45
      %p187 = pneg %p69
      %p188 = pneg %p66
      %p189 = pneg %p90
      %p190 = pneg %p87
      %p191 = pneg %p111
      %p192 = pneg %p108
      %p193 = pneg %p139
      %p194 = pneg %p136
      %s195 = smul.u32 %s20, %s19
      %p196 = scmp.lt.s32.totalorder %s195, 2
      %s197 = scalar_select %p196, %s195, 2
      %s198 = smul.addr %s197, 8
      %s199 = scalar_lea.vmem %s4, %s198
      %p200 = scmp.lt.s32.totalorder %s20, 2
      %s201 = scalar_select %p200, %s20, 2
      %s202 = smul.addr %s201, 8
      %s203 = scalar_lea.vmem %s0, %s202
      %s204 = smul.u32 %s20, %s19
      %p205 = scmp.lt.s32.totalorder %s204, 2
      %s206 = scalar_select %p205, %s204, 2
      %s207 = smul.addr %s206, 8
      %s208 = scalar_lea.vmem %s4, %s207
      %s209 = smul.u32 %s20, %s19
      %v210 = vld [vmem:[%s203] sm:$0xff]
      %v211 = vld [vmem:[%s1] sm:$0xff]
      %v212 = vld [vmem:[%s1 + $0x8] sm:$0xff]
      %vm213 = vcmask 130048
      %v215 = vsel %vm213, %v210, 0
      %217 = vmatprep.subr.mxu0 0.0
      %218 = vmatpush1.msra.mxu0 %v211
      %219 = vmatprep.subr.mxu0 0.0
      %220 = vmatpush1.msra.mxu0 %v212
      %221 = vmatprep.subr.mxu0 0.0
      %222 = vmatpush1.msra.mxu0 0.0
      %223 = vmatprep.subr.mxu0 0.0
      %224 = vmatpush1.msra.mxu0 0.0
      %225 = vmatprep.subr.mxu0 0.0
      %226 = vmatpush1.msra.mxu0 0.0
      %227 = vmatprep.subr.mxu0 0.0
      %228 = vmatpush1.msra.mxu0 0.0
      %229 = vmatprep.subr.mxu0 0.0
      %230 = vmatpush1.msra.mxu0 0.0
      %231 = vmatprep.subr.mxu0 0.0
      %232 = vmatpush1.msra.mxu0 0.0
      %233 = vmatprep.subr.mxu0 0.0
      %234 = vmatpush1.msra.mxu0 0.0
      %235 = vmatprep.subr.mxu0 0.0
      %236 = vmatpush1.msra.mxu0 0.0
      %237 = vmatprep.subr.mxu0 0.0
      %238 = vmatpush1.msra.mxu0 0.0
      %239 = vmatprep.subr.mxu0 0.0
      %240 = vmatpush1.msra.mxu0 0.0
      %241 = vmatprep.subr.mxu0 0.0
      %242 = vmatpush1.msra.mxu0 0.0
      %243 = vmatprep.subr.mxu0 0.0
      %244 = vmatpush1.msra.mxu0 0.0
      %245 = vmatprep.subr.mxu0 0.0
      %246 = vmatpush1.msra.mxu0 0.0
      %247 = vmatprep.subr.mxu0 0.0
      %248 = vmatpush1.msra.mxu0 0.0
      %249 = vmatprep.subr.mxu0 0.0
      %250 = vmatpush1.msra.mxu0 0.0
      %251 = vmatprep.subr.mxu0 0.0
      %252 = vmatpush1.msra.mxu0 0.0
      %253 = vmatprep.subr.mxu0 0.0
      %254 = vmatpush1.msra.mxu0 0.0
      %255 = vmatprep.subr.mxu0 0.0
      %256 = vmatpush1.msra.mxu0 0.0
      %257 = vmatprep.subr.mxu0 0.0
      %258 = vmatpush1.msra.mxu0 0.0
      %259 = vmatprep.subr.mxu0 0.0
      %260 = vmatpush1.msra.mxu0 0.0
      %261 = vmatprep.subr.mxu0 0.0
      %262 = vmatpush1.msra.mxu0 0.0
      %263 = vmatprep.subr.mxu0 0.0
      %264 = vmatpush1.msra.mxu0 0.0
      %265 = vmatprep.subr.mxu0 0.0
      %266 = vmatpush1.msra.mxu0 0.0
      %267 = vmatprep.subr.mxu0 0.0
      %268 = vmatpush1.msra.mxu0 0.0
      %269 = vmatprep.subr.mxu0 0.0
      %270 = vmatpush1.msra.mxu0 0.0
      %271 = vmatprep.subr.mxu0 0.0
      %272 = vmatpush1.msra.mxu0 0.0
      %273 = vmatprep.subr.mxu0 0.0
      %274 = vmatpush1.msra.mxu0 0.0
      %275 = vmatprep.subr.mxu0 0.0
      %276 = vmatpush1.msra.mxu0 0.0
      %277 = vmatprep.subr.mxu0 0.0
      %278 = vmatpush1.msra.mxu0 0.0
      %279 = vmatprep.subr.mxu0 0.0
      %280 = vmatpush1.msra.mxu0 0.0
      %281 = vmatprep.mubr.f32.mxu0 0.0
      %282 = vmatmul.mubr.f32.gmra.mrb[0].mxu0 %v215
      %v283 = vpop.f32.mrb[0].mxu0
      %v284 = vadd.f32 0.0, %v283
      %v285 = vpop.f32.mrb[0].mxu0
      %286 = vdwg.mxu0
      %p287 = scmp.eq.s32.totalorder %s19, 0
      %p288 = scmp.eq.s32.totalorder %s20, 0
      %p289 = pnand %p287, %p288
      %p290 = pneg %p289
      // Predicated region
      $region37: #{encoder_forward.1} parent=35 // pred_check
        _
      $region38: #{encoder_forward.1} parent=35 // pred_check_branch
        %292 = sbr.rel (%p289) target = $region40
      $region39: #{encoder_forward.1} parent=35 // pred_region
        %vm293 = vcmask 253952
        %294 = vst.msk [vmem:[#allocation2] sm:$0x1] %vm293, 0.0
        %295 = vst.msk [vmem:[#allocation3] sm:$0x1] %vm293, 0.0
      $region40: #{encoder_forward.1} parent=35 // pred_fallthru
        _
      // Predicated region
      $region41: #{encoder_forward.1} parent=35 // pred_check
        %p296 = pneg %p287
      $region42: #{encoder_forward.1} parent=35 // pred_check_branch
        %298 = sbr.rel (%p296) target = $region44
      $region43: #{encoder_forward.1} parent=35 // pred_region
        %v299 = vld [vmem:[#allocation2] sm:$0x1]
        %vm300 = vcmask 261120
        %v301 = vsel %vm300, %v284, 0.0
        %v302 = vrot.slane %v301, 4
        %v303 = vadd.f32 %v301, %v302
        %v304 = vrot.slane %v303, 2
        %v305 = vadd.f32 %v303, %v304
        %v306 = vrot.slane %v305, 1
        %v307 = vadd.f32 %v305, %v306
        %v308 = vadd.f32 %v299, %v307
        %vm309 = vcmask 253952
        %310 = vst.msk [vmem:[#allocation2] sm:$0x1] %vm309, %v308
        %v311 = vld [vmem:[#allocation3] sm:$0x1]
        %v312 = vmul.f32 %v284, %v284
        %v313 = vsel %vm300, %v312, 0.0
        %v314 = vrot.slane %v313, 4
        %v315 = vadd.f32 %v313, %v314
        %v316 = vrot.slane %v315, 2
        %v317 = vadd.f32 %v315, %v316
        %v318 = vrot.slane %v317, 1
        %v319 = vadd.f32 %v317, %v318
        %v320 = vadd.f32 %v311, %v319
        %321 = vst.msk [vmem:[#allocation3] sm:$0x1] %vm309, %v320
      $region44: #{encoder_forward.1} parent=35 // pred_fallthru
        _
      %p322 = scmp.eq.s32.totalorder %s20, 2
      %p323 = pnand %p287, %p322
      %p324 = pneg %p323
      // Predicated region
      $region45: #{encoder_forward.1} parent=35 // pred_check
        _
      $region46: #{encoder_forward.1} parent=35 // pred_check_branch
        %326 = sbr.rel (%p323) target = $region48
      $region47: #{encoder_forward.1} parent=35 // pred_region
        %v327 = vld [vmem:[#allocation2] sm:$0x1]
        %v328 = vmul.f32 %v327, 0.05
        %v329 = vld [vmem:[#allocation3] sm:$0x1]
        %v330 = vmul.f32 %v329, 0.05
        %v331 = vmul.f32 %v328, %v328
        %v332 = vsub.f32 %v330, %v331
        %v333 = vmax.f32 %v332, 0.0
        %vm334 = vcmask 253952
        %335 = vst.msk [vmem:[#allocation2] sm:$0x1] %vm334, %v328
        %v336 = vadd.f32 %v333, 1e-05
        %v337 = vrsqrt.pop %v336
        %338 = vst.msk [vmem:[#allocation3] sm:$0x1] %vm334, %v337
      $region48: #{encoder_forward.1} parent=35 // pred_fallthru
        _
      %p339 = scmp.eq.s32.totalorder %s19, 1
      // Predicated region
      $region49: #{encoder_forward.1} parent=35 // pred_check
        %p340 = pneg %p339
      $region50: #{encoder_forward.1} parent=35 // pred_check_branch
        %342 = sbr.rel (%p340) target = $region52
      $region51: #{encoder_forward.1} parent=35 // pred_region
        %v343 = vld [vmem:[#allocation2] sm:$0x1]
        %v345 = vlaneseq
        %v346 = vshrl.u32 %v345, 7
        %v347 = vsub.s32 0, %v346
        %v348 = vrot.slane %v343, %v347
        %v350 = vsub.f32 %v284, %v348
        %v351 = vld [vmem:[#allocation3] sm:$0x1]
        %v353 = vlaneseq
        %v354 = vshrl.u32 %v353, 7
        %v355 = vsub.s32 0, %v354
        %v356 = vrot.slane %v351, %v355
        %v358 = vmul.f32 %v350, %v356
        %v359 = vmul.f32 %v358, 0.1
        %v360 = vmax.f32 %v358, %v359
        %v361 = vld [vmem:[%s2] sm:$0xff]
        %v362 = vld [vmem:[%s2 + $0x8] sm:$0xff]
        %v363 = vld [vmem:[%s2 + $0x10] sm:$0xff]
        %v364 = vld [vmem:[%s2 + $0x18] sm:$0xff]
        %v365 = vld [vmem:[%s3] sm:$0x1]
        %v367 = vlaneseq
        %v368 = vshrl.u32 %v367, 7
        %v369 = vsub.s32 0, %v368
        %v370 = vrot.slane %v365, %v369
        %vm372 = vcmask 261120
        %v374 = vsel %vm372, %v360, 0
        %376 = vmatprep.subr.mxu0 0.0
        %377 = vmatpush1.msra.mxu0 %v361
        %378 = vmatprep.subr.mxu0 0.0
        %379 = vmatpush1.msra.mxu0 %v362
        %380 = vmatprep.subr.mxu0 0.0
        %381 = vmatpush1.msra.mxu0 %v363
        %382 = vmatprep.subr.mxu0 0.0
        %383 = vmatpush1.msra.mxu0 %v364
        %384 = vmatprep.subr.mxu0 0.0
        %385 = vmatpush1.msra.mxu0 0.0
        %386 = vmatprep.subr.mxu0 0.0
        %387 = vmatpush1.msra.mxu0 0.0
        %388 = vmatprep.subr.mxu0 0.0
        %389 = vmatpush1.msra.mxu0 0.0
        %390 = vmatprep.subr.mxu0 0.0
        %391 = vmatpush1.msra.mxu0 0.0
        %392 = vmatprep.subr.mxu0 0.0
        %393 = vmatpush1.msra.mxu0 0.0
        %394 = vmatprep.subr.mxu0 0.0
        %395 = vmatpush1.msra.mxu0 0.0
        %396 = vmatprep.subr.mxu0 0.0
        %397 = vmatpush1.msra.mxu0 0.0
        %398 = vmatprep.subr.mxu0 0.0
        %399 = vmatpush1.msra.mxu0 0.0
        %400 = vmatprep.subr.mxu0 0.0
        %401 = vmatpush1.msra.mxu0 0.0
        %402 = vmatprep.subr.mxu0 0.0
        %403 = vmatpush1.msra.mxu0 0.0
        %404 = vmatprep.subr.mxu0 0.0
        %405 = vmatpush1.msra.mxu0 0.0
        %406 = vmatprep.subr.mxu0 0.0
        %407 = vmatpush1.msra.mxu0 0.0
        %408 = vmatprep.subr.mxu0 0.0
        %409 = vmatpush1.msra.mxu0 0.0
        %410 = vmatprep.subr.mxu0 0.0
        %411 = vmatpush1.msra.mxu0 0.0
        %412 = vmatprep.subr.mxu0 0.0
        %413 = vmatpush1.msra.mxu0 0.0
        %414 = vmatprep.subr.mxu0 0.0
        %415 = vmatpush1.msra.mxu0 0.0
        %416 = vmatprep.subr.mxu0 0.0
        %417 = vmatpush1.msra.mxu0 0.0
        %418 = vmatprep.subr.mxu0 0.0
        %419 = vmatpush1.msra.mxu0 0.0
        %420 = vmatprep.subr.mxu0 0.0
        %421 = vmatpush1.msra.mxu0 0.0
        %422 = vmatprep.subr.mxu0 0.0
        %423 = vmatpush1.msra.mxu0 0.0
        %424 = vmatprep.subr.mxu0 0.0
        %425 = vmatpush1.msra.mxu0 0.0
        %426 = vmatprep.subr.mxu0 0.0
        %427 = vmatpush1.msra.mxu0 0.0
        %428 = vmatprep.subr.mxu0 0.0
        %429 = vmatpush1.msra.mxu0 0.0
        %430 = vmatprep.subr.mxu0 0.0
        %431 = vmatpush1.msra.mxu0 0.0
        %432 = vmatprep.subr.mxu0 0.0
        %433 = vmatpush1.msra.mxu0 0.0
        %434 = vmatprep.subr.mxu0 0.0
        %435 = vmatpush1.msra.mxu0 0.0
        %436 = vmatprep.subr.mxu0 0.0
        %437 = vmatpush1.msra.mxu0 0.0
        %438 = vmatprep.subr.mxu0 0.0
        %439 = vmatpush1.msra.mxu0 0.0
        %440 = vmatprep.mubr.f32.mxu0 0.0
        %441 = vmatmul.mubr.f32.gmra.mrb[0].mxu0 %v374
        %v442 = vpop.f32.mrb[0].mxu0
        %v443 = vadd.f32 %v370, %v442
        %v444 = vpop.f32.mrb[0].mxu0
        %445 = vdwg.mxu0
        %vm446 = vcmask 64512
        %v447 = vsel %vm446, %v443, -inf
        %448 = vmax.xlane.f32.xlu0 %v447
        %v449 = vpop.xlane.xlu0 %448
        %v450 = vsub.f32 %v443, %v449
        %v451 = vmul.f32 %v450, 1.442695
        %v452 = vpow.pop %v451
        %v453 = vsel %vm446, %v452, 0.0
        %454 = vadd.xlane.f32.xlu0 %v453
        %v455 = vpop.xlane.xlu0 %454
        %v456 = vrcp.pop %v455
        %v457 = vmul.f32 %v452, %v456
        %458 = vst.msk [vmem:[%s208] sm:$0xff] %vm446, %v457
      $region52: #{encoder_forward.1} parent=35 // pred_fallthru
        _
      %s459 = smul.u32 %s20, %s19
      %p460 = scmp.lt.s32.totalorder %s459, 2
      %s461 = scalar_select %p460, %s459, 2
      %s462 = smul.addr %s461, 8
      %s463 = scalar_lea.vmem %s4, %s462
      // Predicated region
      $region53: #{encoder_forward.1} parent=35 // pred_check
        %p464 = pneg %p136
      $region54: #{encoder_forward.1} parent=35 // pred_check_branch
        %466 = sbr.rel (%p464) target = $region56
      $region55: #{encoder_forward.1} parent=35 // pred_region
        %s467 = smul.u32 %s20, %s19
      $region56: #{encoder_forward.1} parent=35 // pred_fallthru
        _
    $region36: #{encoder_forward.1} parent=5 // pred_fallthru
      _
    %p468 = scmp.le.s32.totalorder 2, %s10
    // Predicated region
    $region57: #{encoder_forward.1} parent=5 // pred_check
      %p469 = pneg %p468
    $region58: #{encoder_forward.1} parent=5 // pred_check_branch
      %471 = sbr.rel (%p469) target = $region60
    $region59: #{encoder_forward.1} parent=5 // pred_region
      %s472 = ssub.s32 %s10, 2
      // Predicated region
      $region61: #{encoder_forward.1} parent=59 // pred_check
        %p473 = pneg %p142
      $region62: #{encoder_forward.1} parent=59 // pred_check_branch
        %475 = sbr.rel (%p473) target = $region64
      $region63: #{encoder_forward.1} parent=59 // pred_region
        %s476 = smul.u32 %s22, %s21
        %p477 = scmp.lt.s32.totalorder %s476, 2
        %s478 = scalar_select %p477, %s476, 2
        %s479 = smul.addr %s478, 8
        %s480 = scalar_lea.vmem %s4, %s479
      $region64: #{encoder_forward.1} parent=59 // pred_fallthru
        _
    $region60: #{encoder_forward.1} parent=5 // pred_fallthru
      _
  $region6: #{encoder_forward.1} parent=0 // loop_footer
    %s14 = sadd.s32 1, %s10
  $region7: #{encoder_forward.1} parent=0 // loop_footer_branch
    %9 = sbr.rel target = $region3
  $region8: #{encoder_forward.1} parent=0 // loop_exit
    _

</llo_original>
